<compile_context>
chip_gen: v5e
topology: v5e:2x2
jax: 0.10.0
libtpu: 0.0.40
codegen_flags: <defaults>
</compile_context>

<pallas_src>
import jax
import jax.numpy as jnp
from jax import lax
from jax.experimental import pallas as pl
from jax.experimental.pallas import tpu as pltpu

_EPS_COS = 1e-8   # nn.CosineEmbeddingLoss / F.cosine_similarity default eps
_EPS_SIM = 1e-6   # nn.CosineSimilarity(dim=1, eps=1e-06) used in delta_list


def _sen_loss_kernel(x_ref, t_ref, m_ref, o_ref):
    """One batch-group tile.

    x_ref, t_ref : (S, bpt, D)  logits / targets (native dtype)
    m_ref        : (5, bpt, S)  f32 [valid, pair_valid, is_pad_logit, pad_tgt, real]
    o_ref        : (5, bpt, S)  f32 [sq_err, 1-cos, bce, delta_logits, delta_tgt]
    """
    x = x_ref[...].astype(jnp.float32)
    t = t_ref[...].astype(jnp.float32)
    m = m_ref[...]
    valid, pairv, bx, by, real = m[0], m[1], m[2], m[3], m[4]      # (bpt, S)

    # ---- per-row stats, computed once and reused ---------------------------
    dot = jnp.sum(x * t, axis=-1)          # (S, bpt)
    nx2 = jnp.sum(x * x, axis=-1)
    nt2 = jnp.sum(t * t, axis=-1)

    # Next-sentence views: the partner of sentence s is s+1 of the same story;
    # a tile holds whole stories so the pair never leaves the tile.  The
    # wrap-around row (s == S-1) is killed by the pair-valid mask.
    x_n = jnp.roll(x, -1, axis=0)
    t_n = jnp.roll(t, -1, axis=0)
    nx2_n = jnp.roll(nx2, -1, axis=0)
    nt2_n = jnp.roll(nt2, -1, axis=0)
    dxx = jnp.sum(x * x_n, axis=-1)        # (S, bpt)
    dtt = jnp.sum(t * t_n, axis=-1)

    # rsqrt -> EUP; no sqrt / divide on the VALU.
    sse = jnp.transpose(nx2 + nt2 - 2.0 * dot)                                   # (bpt, S)
    cos = jnp.transpose(dot * lax.rsqrt(jnp.maximum(nx2 * nt2, _EPS_COS * _EPS_COS)))
    dlg = jnp.transpose(dxx * lax.rsqrt(jnp.maximum(nx2 * nx2_n, _EPS_SIM * _EPS_SIM)))
    dtg = jnp.transpose(dtt * lax.rsqrt(jnp.maximum(nt2 * nt2_n, _EPS_SIM * _EPS_SIM)))

    # BCEWithLogits per position (reference averages over *all* S*B positions,
    # so only fake padded batch rows are masked out via `real`).
    bce = jnp.maximum(bx, 0.0) - bx * by + jnp.log(1.0 + jnp.exp(-jnp.abs(bx)))

    # where() (not multiply) so undefined data in a partial trailing batch
    # block can never leak NaN/Inf into the sums.
    o_ref[0] = jnp.where(valid > 0.5, sse, 0.0)
    o_ref[1] = jnp.where(valid > 0.5, 1.0 - cos, 0.0)
    o_ref[2] = jnp.where(real > 0.5, bce, 0.0)
    o_ref[3] = jnp.where(pairv > 0.5, dlg, 0.0)
    o_ref[4] = jnp.where(pairv > 0.5, dtg, 0.0)


def _choose_bpt(S, B, D, itemsize):
    # Keep one input block around <=2 MiB so 2 inputs x 2 pipeline buffers stay
    # far below even v5e's 16 MiB default scoped VMEM (and v7x's 64 MiB VMEM).
    cap = max(1, (2 * 1024 * 1024) // max(S * D * itemsize, 1))
    bpt = min(B, cap, max(1, -(-B // 4)))   # aim for >=4 pipelined grid steps
    if bpt != B:
        bpt = max(8, (bpt // 8) * 8)        # Mosaic: sublane block dim % 8 == 0
        if bpt >= B:
            bpt = B                         # ... or equal to the full extent
    return bpt


def sen_embedding_loss(logits, is_pad, tgt_out, tgt_padding_mask,
                       lambda1, lambda2, lambda3, lambda4, lambda5):
    """JAX/Pallas equivalent of SenEmbedding_Loss.forward."""
    S, B, D = logits.shape
    f32 = jnp.float32

    # ---- small (B, S) mask / aux planes ------------------------------------
    valid_bs = jnp.logical_not(tgt_padding_mask).astype(f32)            # (B, S)
    pair_bs = jnp.concatenate(
        [valid_bs[:, :-1] * valid_bs[:, 1:], jnp.zeros((B, 1), f32)], axis=1)
    ispad_bs = jnp.transpose(jnp.reshape(is_pad, (S, B))).astype(f32)   # (B, S)
    ytgt_bs = jnp.asarray(tgt_padding_mask).astype(f32)                 # (B, S)
    real_bs = jnp.ones((B, S), f32)

    itemsize = max(jnp.dtype(logits.dtype).itemsize,
                   jnp.dtype(tgt_out.dtype).itemsize)
    bpt = _choose_bpt(S, B, D, itemsize)
    grid = -(-B // bpt)
    b_pad = grid * bpt

    masks = jnp.stack([valid_bs, pair_bs, ispad_bs, ytgt_bs, real_bs], axis=0)
    masks = jnp.pad(masks, ((0, 0), (0, b_pad - B), (0, 0)))            # (5, b_pad, S)

    out = pl.pallas_call(
        _sen_loss_kernel,
        out_shape=jax.ShapeDtypeStruct((5, b_pad, S), f32),
        grid_spec=pltpu.PrefetchScalarGridSpec(
            num_scalar_prefetch=0,
            grid=(grid,),
            in_specs=[
                pl.BlockSpec((S, bpt, D), lambda i: (0, i, 0)),
                pl.BlockSpec((S, bpt, D), lambda i: (0, i, 0)),
                pl.BlockSpec((5, bpt, S), lambda i: (0, i, 0)),
            ],
            out_specs=pl.BlockSpec((5, bpt, S), lambda i: (0, i, 0)),
        ),
        compiler_params=pltpu.CompilerParams(
            dimension_semantics=("parallel",),
            vmem_limit_bytes=32 * 1024 * 1024,
        ),
    )(logits, tgt_out, masks)

    n_rows = jnp.sum(valid_bs)
    n_pairs = jnp.sum(pair_bs)

    loss_mse = jnp.sum(out[0]) / jnp.maximum(n_rows * D, 1.0)
    loss_cos = jnp.sum(out[1]) / jnp.maximum(n_rows, 1.0)
    loss_bce = jnp.sum(out[2]) / float(S * B)

    # ---- delta list (batch-major, matching PyTorch's loop order) -----------
    pair_flat = jnp.reshape(pair_bs, (-1,))            # (B*S,)
    dlog = jnp.reshape(out[3, :B], (-1,))              # invalid slots already 0
    dtgt = jnp.reshape(out[4, :B], (-1,))

    dd = dlog - dtgt
    loss_delta = jnp.sum(jnp.where(pair_flat > 0.5, dd * dd, 0.0)) \
        / jnp.maximum(n_pairs, 1.0)

    # ---- delta-of-delta needs adjacency in the *compacted* delta list ------
    # TODO(synk): PyTorch builds the delta lists in float64; TPU keeps f32.
    validp = pair_flat > 0.5
    np_i = jnp.sum(validp.astype(jnp.int32))
    n_slots = pair_flat.shape[0]
    pos = jnp.where(validp, jnp.cumsum(validp.astype(jnp.int32)) - 1, n_slots)
    dlog_c = jnp.zeros((n_slots,), f32).at[pos].set(dlog, mode="drop")
    dtgt_c = jnp.zeros((n_slots,), f32).at[pos].set(dtgt, mode="drop")

    def dod(d):
        den = jnp.where(d[:-1] != 0.0, d[:-1], 1e-6)
        return (d[1:] - d[:-1]) / den

    sel = jnp.arange(n_slots - 1) < (np_i - 1)
    ddd = dod(dlog_c) - dod(dtgt_c)
    loss_dod = jnp.sum(jnp.where(sel, ddd * ddd, 0.0)) \
        / jnp.maximum(np_i - 1, 1).astype(f32) / 1000.0

    return (lambda1 * loss_mse + lambda2 * loss_cos + lambda3 * loss_delta
            + lambda4 * loss_dod + lambda5 * loss_bce)


if __name__ == "__main__":
    S, B, D = 8, 2, 32
    key = jax.random.PRNGKey(0)
    k1, k2, k3 = jax.random.split(key, 3)

    logits = jax.random.normal(k1, (S, B, D), dtype=jnp.float32)
    tgt_out = jax.random.normal(k2, (S, B, D), dtype=jnp.float32)
    is_pad = jax.random.normal(k3, (S, B, 1), dtype=jnp.float32)

    # batch 0 has 6 valid sentences, batch 1 has 5 valid sentences
    valid_lens = jnp.array([6, 5])
    tgt_padding_mask = jnp.arange(S)[None, :] >= valid_lens[:, None]    # (B, S) bool

    loss = jax.jit(sen_embedding_loss)(
        logits, is_pad, tgt_out, tgt_padding_mask, 1.0, 0.5, 0.3, 0.2, 0.1)
    loss = jax.block_until_ready(loss)
    assert jnp.isfinite(loss), loss
    print("KERNEL_OK")
</pallas_src>

<mosaic_0001>
module attributes {stable_mosaic.version = 11 : i64} {
  func.func @_sen_loss_kernel(%arg0: i32, %arg1: memref<8x2x32xf32, #tpu.memory_space<vmem>>, %arg2: memref<8x2x32xf32, #tpu.memory_space<vmem>>, %arg3: memref<5x2x8xf32, #tpu.memory_space<vmem>>, %arg4: memref<5x2x8xf32, #tpu.memory_space<vmem>>) attributes {dimension_semantics = [#tpu.dimension_semantics<parallel>], iteration_bounds = array<i64: 1>, scalar_prefetch = 0 : i64, scratch_operands = 0 : i64, tpu.core_type = #tpu.core_type<tc>, window_params = [{transform_indices = @transform_0, window_bounds = array<i64: 8, 2, 32>}, {transform_indices = @transform_1, window_bounds = array<i64: 8, 2, 32>}, {transform_indices = @transform_2, window_bounds = array<i64: 5, 2, 8>}, {transform_indices = @transform_3, window_bounds = array<i64: 5, 2, 8>}]} {
    %c0 = arith.constant 0 : index
    %c0_0 = arith.constant 0 : index
    %c0_1 = arith.constant 0 : index
    %0 = vector.load %arg1[%c0, %c0_0, %c0_1] : memref<8x2x32xf32, #tpu.memory_space<vmem>>, vector<8x2x32xf32>
    %c0_2 = arith.constant 0 : index
    %c0_3 = arith.constant 0 : index
    %c0_4 = arith.constant 0 : index
    %1 = vector.load %arg2[%c0_2, %c0_3, %c0_4] : memref<8x2x32xf32, #tpu.memory_space<vmem>>, vector<8x2x32xf32>
    %c0_5 = arith.constant 0 : index
    %c0_6 = arith.constant 0 : index
    %c0_7 = arith.constant 0 : index
    %2 = vector.load %arg3[%c0_5, %c0_6, %c0_7] : memref<5x2x8xf32, #tpu.memory_space<vmem>>, vector<5x2x8xf32>
    %3 = vector.extract_strided_slice %2 {offsets = [0, 0, 0], sizes = [1, 2, 8], strides = [1, 1, 1]} : vector<5x2x8xf32> to vector<1x2x8xf32>
    %4 = vector.shape_cast %3 : vector<1x2x8xf32> to vector<2x8xf32>
    %5 = vector.extract_strided_slice %2 {offsets = [1, 0, 0], sizes = [1, 2, 8], strides = [1, 1, 1]} : vector<5x2x8xf32> to vector<1x2x8xf32>
    %6 = vector.shape_cast %5 : vector<1x2x8xf32> to vector<2x8xf32>
    %7 = vector.extract_strided_slice %2 {offsets = [2, 0, 0], sizes = [1, 2, 8], strides = [1, 1, 1]} : vector<5x2x8xf32> to vector<1x2x8xf32>
    %8 = vector.shape_cast %7 : vector<1x2x8xf32> to vector<2x8xf32>
    %9 = vector.extract_strided_slice %2 {offsets = [3, 0, 0], sizes = [1, 2, 8], strides = [1, 1, 1]} : vector<5x2x8xf32> to vector<1x2x8xf32>
    %10 = vector.shape_cast %9 : vector<1x2x8xf32> to vector<2x8xf32>
    %11 = vector.extract_strided_slice %2 {offsets = [4, 0, 0], sizes = [1, 2, 8], strides = [1, 1, 1]} : vector<5x2x8xf32> to vector<1x2x8xf32>
    %12 = vector.shape_cast %11 : vector<1x2x8xf32> to vector<2x8xf32>
    %13 = arith.mulf %0, %1 : vector<8x2x32xf32>
    %cst = arith.constant dense<0.000000e+00> : vector<8x2xf32>
    %14 = vector.multi_reduction <add>, %13, %cst [2] : vector<8x2x32xf32> to vector<8x2xf32>
    %15 = arith.mulf %0, %0 : vector<8x2x32xf32>
    %cst_8 = arith.constant dense<0.000000e+00> : vector<8x2xf32>
    %16 = vector.multi_reduction <add>, %15, %cst_8 [2] : vector<8x2x32xf32> to vector<8x2xf32>
    %17 = arith.mulf %1, %1 : vector<8x2x32xf32>
    %cst_9 = arith.constant dense<0.000000e+00> : vector<8x2xf32>
    %18 = vector.multi_reduction <add>, %17, %cst_9 [2] : vector<8x2x32xf32> to vector<8x2xf32>
    %19 = vector.extract_strided_slice %0 {offsets = [1, 0, 0], sizes = [7, 2, 32], strides = [1, 1, 1]} : vector<8x2x32xf32> to vector<7x2x32xf32>
    %20 = vector.extract_strided_slice %0 {offsets = [0, 0, 0], sizes = [1, 2, 32], strides = [1, 1, 1]} : vector<8x2x32xf32> to vector<1x2x32xf32>
    %21 = tpu.concatenate %19, %20 in 0 : vector<7x2x32xf32>, vector<1x2x32xf32> -> vector<8x2x32xf32>
    %22 = vector.extract_strided_slice %1 {offsets = [1, 0, 0], sizes = [7, 2, 32], strides = [1, 1, 1]} : vector<8x2x32xf32> to vector<7x2x32xf32>
    %23 = vector.extract_strided_slice %1 {offsets = [0, 0, 0], sizes = [1, 2, 32], strides = [1, 1, 1]} : vector<8x2x32xf32> to vector<1x2x32xf32>
    %24 = tpu.concatenate %22, %23 in 0 : vector<7x2x32xf32>, vector<1x2x32xf32> -> vector<8x2x32xf32>
    %25 = vector.extract_strided_slice %16 {offsets = [1, 0], sizes = [7, 2], strides = [1, 1]} : vector<8x2xf32> to vector<7x2xf32>
    %26 = vector.extract_strided_slice %16 {offsets = [0, 0], sizes = [1, 2], strides = [1, 1]} : vector<8x2xf32> to vector<1x2xf32>
    %27 = tpu.concatenate %25, %26 in 0 : vector<7x2xf32>, vector<1x2xf32> -> vector<8x2xf32>
    %28 = vector.extract_strided_slice %18 {offsets = [1, 0], sizes = [7, 2], strides = [1, 1]} : vector<8x2xf32> to vector<7x2xf32>
    %29 = vector.extract_strided_slice %18 {offsets = [0, 0], sizes = [1, 2], strides = [1, 1]} : vector<8x2xf32> to vector<1x2xf32>
    %30 = tpu.concatenate %28, %29 in 0 : vector<7x2xf32>, vector<1x2xf32> -> vector<8x2xf32>
    %31 = arith.mulf %0, %21 : vector<8x2x32xf32>
    %cst_10 = arith.constant dense<0.000000e+00> : vector<8x2xf32>
    %32 = vector.multi_reduction <add>, %31, %cst_10 [2] : vector<8x2x32xf32> to vector<8x2xf32>
    %33 = arith.mulf %1, %24 : vector<8x2x32xf32>
    %cst_11 = arith.constant dense<0.000000e+00> : vector<8x2xf32>
    %34 = vector.multi_reduction <add>, %33, %cst_11 [2] : vector<8x2x32xf32> to vector<8x2xf32>
    %35 = arith.addf %16, %18 : vector<8x2xf32>
    %cst_12 = arith.constant 2.000000e+00 : f32
    %36 = vector.broadcast %cst_12 : f32 to vector<8x2xf32>
    %37 = arith.mulf %36, %14 : vector<8x2xf32>
    %38 = arith.subf %35, %37 : vector<8x2xf32>
    %39 = tpu.transpose %38, [1, 0] : vector<8x2xf32> -> vector<2x8xf32>
    %40 = arith.mulf %16, %18 : vector<8x2xf32>
    %cst_13 = arith.constant 1.000000e-16 : f32
    %41 = vector.broadcast %cst_13 : f32 to vector<8x2xf32>
    %42 = arith.maximumf %40, %41 : vector<8x2xf32>
    %43 = math.rsqrt %42 : vector<8x2xf32>
    %44 = arith.mulf %14, %43 : vector<8x2xf32>
    %45 = tpu.transpose %44, [1, 0] : vector<8x2xf32> -> vector<2x8xf32>
    %46 = arith.mulf %16, %27 : vector<8x2xf32>
    %cst_14 = arith.constant 9.99999996E-13 : f32
    %47 = vector.broadcast %cst_14 : f32 to vector<8x2xf32>
    %48 = arith.maximumf %46, %47 : vector<8x2xf32>
    %49 = math.rsqrt %48 : vector<8x2xf32>
    %50 = arith.mulf %32, %49 : vector<8x2xf32>
    %51 = tpu.transpose %50, [1, 0] : vector<8x2xf32> -> vector<2x8xf32>
    %52 = arith.mulf %18, %30 : vector<8x2xf32>
    %cst_15 = arith.constant 9.99999996E-13 : f32
    %53 = vector.broadcast %cst_15 : f32 to vector<8x2xf32>
    %54 = arith.maximumf %52, %53 : vector<8x2xf32>
    %55 = math.rsqrt %54 : vector<8x2xf32>
    %56 = arith.mulf %34, %55 : vector<8x2xf32>
    %57 = tpu.transpose %56, [1, 0] : vector<8x2xf32> -> vector<2x8xf32>
    %cst_16 = arith.constant 0.000000e+00 : f32
    %58 = vector.broadcast %cst_16 : f32 to vector<2x8xf32>
    %59 = arith.maximumf %8, %58 : vector<2x8xf32>
    %60 = arith.mulf %8, %10 : vector<2x8xf32>
    %61 = arith.subf %59, %60 : vector<2x8xf32>
    %62 = math.absf %8 : vector<2x8xf32>
    %cst_17 = arith.constant 0.000000e+00 : f32
    %63 = vector.broadcast %cst_17 : f32 to vector<2x8xf32>
    %64 = arith.subf %63, %62 : vector<2x8xf32>
    %65 = math.exp %64 : vector<2x8xf32>
    %cst_18 = arith.constant 1.000000e+00 : f32
    %66 = vector.broadcast %cst_18 : f32 to vector<2x8xf32>
    %67 = arith.addf %66, %65 : vector<2x8xf32>
    %68 = math.log %67 : vector<2x8xf32>
    %69 = arith.addf %61, %68 : vector<2x8xf32>
    %cst_19 = arith.constant 5.000000e-01 : f32
    %70 = vector.broadcast %cst_19 : f32 to vector<2x8xf32>
    %71 = arith.cmpf ogt, %4, %70 : vector<2x8xf32>
    %cst_20 = arith.constant 0.000000e+00 : f32
    %72 = vector.broadcast %cst_20 : f32 to vector<2x8xf32>
    %73 = arith.select %71, %39, %72 : vector<2x8xi1>, vector<2x8xf32>
    %c0_21 = arith.constant 0 : index
    %c0_22 = arith.constant 0 : index
    %c0_23 = arith.constant 0 : index
    %74 = vector.load %arg4[%c0_21, %c0_22, %c0_23] : memref<5x2x8xf32, #tpu.memory_space<vmem>>, vector<1x2x8xf32>
    %75 = vector.shape_cast %74 : vector<1x2x8xf32> to vector<2x8xf32>
    %76 = vector.shape_cast %73 : vector<2x8xf32> to vector<1x2x8xf32>
    tpu.vector_store %arg4[%c0_21, %c0_22, %c0_23], %76 {strides = array<i32>} : memref<5x2x8xf32, #tpu.memory_space<vmem>>, vector<1x2x8xf32>,
    %cst_24 = arith.constant 5.000000e-01 : f32
    %77 = vector.broadcast %cst_24 : f32 to vector<2x8xf32>
    %78 = arith.cmpf ogt, %4, %77 : vector<2x8xf32>
    %cst_25 = arith.constant 1.000000e+00 : f32
    %79 = vector.broadcast %cst_25 : f32 to vector<2x8xf32>
    %80 = arith.subf %79, %45 : vector<2x8xf32>
    %cst_26 = arith.constant 0.000000e+00 : f32
    %81 = vector.broadcast %cst_26 : f32 to vector<2x8xf32>
    %82 = arith.select %78, %80, %81 : vector<2x8xi1>, vector<2x8xf32>
    %c1 = arith.constant 1 : index
    %c0_27 = arith.constant 0 : index
    %c0_28 = arith.constant 0 : index
    %83 = vector.load %arg4[%c1, %c0_27, %c0_28] : memref<5x2x8xf32, #tpu.memory_space<vmem>>, vector<1x2x8xf32>
    %84 = vector.shape_cast %83 : vector<1x2x8xf32> to vector<2x8xf32>
    %85 = vector.shape_cast %82 : vector<2x8xf32> to vector<1x2x8xf32>
    tpu.vector_store %arg4[%c1, %c0_27, %c0_28], %85 {strides = array<i32>} : memref<5x2x8xf32, #tpu.memory_space<vmem>>, vector<1x2x8xf32>,
    %cst_29 = arith.constant 5.000000e-01 : f32
    %86 = vector.broadcast %cst_29 : f32 to vector<2x8xf32>
    %87 = arith.cmpf ogt, %12, %86 : vector<2x8xf32>
    %cst_30 = arith.constant 0.000000e+00 : f32
    %88 = vector.broadcast %cst_30 : f32 to vector<2x8xf32>
    %89 = arith.select %87, %69, %88 : vector<2x8xi1>, vector<2x8xf32>
    %c2 = arith.constant 2 : index
    %c0_31 = arith.constant 0 : index
    %c0_32 = arith.constant 0 : index
    %90 = vector.load %arg4[%c2, %c0_31, %c0_32] : memref<5x2x8xf32, #tpu.memory_space<vmem>>, vector<1x2x8xf32>
    %91 = vector.shape_cast %90 : vector<1x2x8xf32> to vector<2x8xf32>
    %92 = vector.shape_cast %89 : vector<2x8xf32> to vector<1x2x8xf32>
    tpu.vector_store %arg4[%c2, %c0_31, %c0_32], %92 {strides = array<i32>} : memref<5x2x8xf32, #tpu.memory_space<vmem>>, vector<1x2x8xf32>,
    %cst_33 = arith.constant 5.000000e-01 : f32
    %93 = vector.broadcast %cst_33 : f32 to vector<2x8xf32>
    %94 = arith.cmpf ogt, %6, %93 : vector<2x8xf32>
    %cst_34 = arith.constant 0.000000e+00 : f32
    %95 = vector.broadcast %cst_34 : f32 to vector<2x8xf32>
    %96 = arith.select %94, %51, %95 : vector<2x8xi1>, vector<2x8xf32>
    %c3 = arith.constant 3 : index
    %c0_35 = arith.constant 0 : index
    %c0_36 = arith.constant 0 : index
    %97 = vector.load %arg4[%c3, %c0_35, %c0_36] : memref<5x2x8xf32, #tpu.memory_space<vmem>>, vector<1x2x8xf32>
    %98 = vector.shape_cast %97 : vector<1x2x8xf32> to vector<2x8xf32>
    %99 = vector.shape_cast %96 : vector<2x8xf32> to vector<1x2x8xf32>
    tpu.vector_store %arg4[%c3, %c0_35, %c0_36], %99 {strides = array<i32>} : memref<5x2x8xf32, #tpu.memory_space<vmem>>, vector<1x2x8xf32>,
    %cst_37 = arith.constant 5.000000e-01 : f32
    %100 = vector.broadcast %cst_37 : f32 to vector<2x8xf32>
    %101 = arith.cmpf ogt, %6, %100 : vector<2x8xf32>
    %cst_38 = arith.constant 0.000000e+00 : f32
    %102 = vector.broadcast %cst_38 : f32 to vector<2x8xf32>
    %103 = arith.select %101, %57, %102 : vector<2x8xi1>, vector<2x8xf32>
    %c4 = arith.constant 4 : index
    %c0_39 = arith.constant 0 : index
    %c0_40 = arith.constant 0 : index
    %104 = vector.load %arg4[%c4, %c0_39, %c0_40] : memref<5x2x8xf32, #tpu.memory_space<vmem>>, vector<1x2x8xf32>
    %105 = vector.shape_cast %104 : vector<1x2x8xf32> to vector<2x8xf32>
    %106 = vector.shape_cast %103 : vector<2x8xf32> to vector<1x2x8xf32>
    tpu.vector_store %arg4[%c4, %c0_39, %c0_40], %106 {strides = array<i32>} : memref<5x2x8xf32, #tpu.memory_space<vmem>>, vector<1x2x8xf32>,
    return
  }
  func.func @transform_0(%arg0: i32) -> (i32, i32, i32) {
    %c0_i32 = arith.constant 0 : i32
    %c0_i32_0 = arith.constant 0 : i32
    %c0_i32_1 = arith.constant 0 : i32
    return %c0_i32, %arg0, %c0_i32_0 : i32, i32, i32
  }
  func.func @transform_1(%arg0: i32) -> (i32, i32, i32) {
    %c0_i32 = arith.constant 0 : i32
    %c0_i32_0 = arith.constant 0 : i32
    %c0_i32_1 = arith.constant 0 : i32
    return %c0_i32, %arg0, %c0_i32_0 : i32, i32, i32
  }
  func.func @transform_2(%arg0: i32) -> (i32, i32, i32) {
    %c0_i32 = arith.constant 0 : i32
    %c0_i32_0 = arith.constant 0 : i32
    %c0_i32_1 = arith.constant 0 : i32
    return %c0_i32, %arg0, %c0_i32_0 : i32, i32, i32
  }
  func.func @transform_3(%arg0: i32) -> (i32, i32, i32) {
    %c0_i32 = arith.constant 0 : i32
    %c0_i32_0 = arith.constant 0 : i32
    %c0_i32_1 = arith.constant 0 : i32
    return %c0_i32, %arg0, %c0_i32_0 : i32, i32, i32
  }
}

</mosaic_0001>

<llo_original>
// kernel: sen_embedding_loss.1
$region0: #{sen_embedding_loss.1}
  #allocation0 [shape = 'u32[]', space=smem, size = 0x4, offset = 0x4, fixed_abs, tag = 'smem constant byte address 0x4 - core index']
  #allocation1 [shape = 'u32[72,128]{1,0:T(1,128)}', space=vmem, size = 0x9000, scoped, tag = 'internal scratch']
  %s0 = inlined_call_operand.vmem [shape: f32[8,2,32], index: 0, kind: input, shape index: {}]
  %s1 = inlined_call_operand.vmem [shape: f32[8,2,32], index: 1, kind: input, shape index: {}]
  %s2 = inlined_call_operand.vmem [shape: f32[5,2,8], index: 2, kind: input, shape index: {}]
  %s3 = inlined_call_operand.vmem [shape: f32[5,2,8], index: 3, kind: output, shape index: {}]
  %s4 = sld [smem:[#allocation0]]
  $region22: #{sen_embedding_loss.1} parent=0
    _
  %s6 = ssub.s32 1, %s4
  %s7 = scalar_select 0, %s6, %s4
  // Predicated region
  $region2: #{sen_embedding_loss.1} parent=0 // pred_check
    _
  $region3: #{sen_embedding_loss.1} parent=0 // pred_check_branch
    %9 = sbr.rel (0) target = $region5
  $region4: #{sen_embedding_loss.1} parent=0 // pred_region
    _
  $region5: #{sen_embedding_loss.1} parent=0 // pred_fallthru
    _
  // Predicated region
  $region6: #{sen_embedding_loss.1} parent=0 // pred_check
    _
  $region7: #{sen_embedding_loss.1} parent=0 // pred_check_branch
    %11 = sbr.rel (0) target = $region9
  $region8: #{sen_embedding_loss.1} parent=0 // pred_region
    _
  $region9: #{sen_embedding_loss.1} parent=0 // pred_fallthru
    _
  // Predicated region
  $region10: #{sen_embedding_loss.1} parent=0 // pred_check
    _
  $region11: #{sen_embedding_loss.1} parent=0 // pred_check_branch
    %13 = sbr.rel (0) target = $region13
  $region12: #{sen_embedding_loss.1} parent=0 // pred_region
    _
  $region13: #{sen_embedding_loss.1} parent=0 // pred_fallthru
    _
  %v14 = vld [vmem:[%s0] sm:$0x3]
  %v15 = vld [vmem:[%s0 + $0x2] sm:$0x3]
  %v16 = vld [vmem:[%s0 + $0x4] sm:$0x3]
  %v17 = vld [vmem:[%s0 + $0x6] sm:$0x3]
  %v18 = vld [vmem:[%s0 + $0x8] sm:$0x3]
  %v19 = vld [vmem:[%s0 + $0xa] sm:$0x3]
  %v20 = vld [vmem:[%s0 + $0xc] sm:$0x3]
  %v21 = vld [vmem:[%s0 + $0xe] sm:$0x3]
  %v22 = vld [vmem:[%s1] sm:$0x3]
  %v23 = vld [vmem:[%s1 + $0x2] sm:$0x3]
  %v24 = vld [vmem:[%s1 + $0x4] sm:$0x3]
  %v25 = vld [vmem:[%s1 + $0x6] sm:$0x3]
  %v26 = vld [vmem:[%s1 + $0x8] sm:$0x3]
  %v27 = vld [vmem:[%s1 + $0xa] sm:$0x3]
  %v28 = vld [vmem:[%s1 + $0xc] sm:$0x3]
  %v29 = vld [vmem:[%s1 + $0xe] sm:$0x3]
  %v30 = vld [vmem:[%s2] sm:$0x3]
  %v31 = vld [vmem:[%s2 + $0x2] sm:$0x3]
  %v32 = vld [vmem:[%s2 + $0x4] sm:$0x3]
  %v33 = vld [vmem:[%s2 + $0x6] sm:$0x3]
  %v34 = vld [vmem:[%s2 + $0x8] sm:$0x3]
  %v35 = vmul.f32 %v14, %v22
  %v36 = vmul.f32 %v15, %v23
  %v37 = vmul.f32 %v16, %v24
  %v38 = vmul.f32 %v17, %v25
  %v39 = vmul.f32 %v18, %v26
  %v40 = vmul.f32 %v19, %v27
  %v41 = vmul.f32 %v20, %v28
  %v42 = vmul.f32 %v21, %v29
  %vm43 = vcmask 254976
  %v44 = vsel %vm43, %v35, 0.0
  %45 = vadd.xlane.f32.xlu0 %v44
  %v46 = vpop.xlane.xlu0 %45
  %v47 = vsel %vm43, %v36, 0.0
  %48 = vadd.xlane.f32.xlu0 %v47
  %v49 = vpop.xlane.xlu0 %48
  %v50 = vsel %vm43, %v37, 0.0
  %51 = vadd.xlane.f32.xlu0 %v50
  %v52 = vpop.xlane.xlu0 %51
  %v53 = vsel %vm43, %v38, 0.0
  %54 = vadd.xlane.f32.xlu0 %v53
  %v55 = vpop.xlane.xlu0 %54
  %v56 = vsel %vm43, %v39, 0.0
  %57 = vadd.xlane.f32.xlu0 %v56
  %v58 = vpop.xlane.xlu0 %57
  %v59 = vsel %vm43, %v40, 0.0
  %60 = vadd.xlane.f32.xlu0 %v59
  %v61 = vpop.xlane.xlu0 %60
  %v62 = vsel %vm43, %v41, 0.0
  %63 = vadd.xlane.f32.xlu0 %v62
  %v64 = vpop.xlane.xlu0 %63
  %v65 = vsel %vm43, %v42, 0.0
  %66 = vadd.xlane.f32.xlu0 %v65
  %v67 = vpop.xlane.xlu0 %66
  %v68 = vmul.f32 %v14, %v14
  %v69 = vmul.f32 %v15, %v15
  %v70 = vmul.f32 %v16, %v16
  %v71 = vmul.f32 %v17, %v17
  %v72 = vmul.f32 %v18, %v18
  %v73 = vmul.f32 %v19, %v19
  %v74 = vmul.f32 %v20, %v20
  %v75 = vmul.f32 %v21, %v21
  %v76 = vsel %vm43, %v68, 0.0
  %77 = vadd.xlane.f32.xlu0 %v76
  %v78 = vpop.xlane.xlu0 %77
  %v79 = vsel %vm43, %v69, 0.0
  %80 = vadd.xlane.f32.xlu0 %v79
  %v81 = vpop.xlane.xlu0 %80
  %v82 = vsel %vm43, %v70, 0.0
  %83 = vadd.xlane.f32.xlu0 %v82
  %v84 = vpop.xlane.xlu0 %83
  %v85 = vsel %vm43, %v71, 0.0
  %86 = vadd.xlane.f32.xlu0 %v85
  %v87 = vpop.xlane.xlu0 %86
  %v88 = vsel %vm43, %v72, 0.0
  %89 = vadd.xlane.f32.xlu0 %v88
  %v90 = vpop.xlane.xlu0 %89
  %v91 = vsel %vm43, %v73, 0.0
  %92 = vadd.xlane.f32.xlu0 %v91
  %v93 = vpop.xlane.xlu0 %92
  %v94 = vsel %vm43, %v74, 0.0
  %95 = vadd.xlane.f32.xlu0 %v94
  %v96 = vpop.xlane.xlu0 %95
  %v97 = vsel %vm43, %v75, 0.0
  %98 = vadd.xlane.f32.xlu0 %v97
  %v99 = vpop.xlane.xlu0 %98
  %v100 = vmul.f32 %v22, %v22
  %v101 = vmul.f32 %v23, %v23
  %v102 = vmul.f32 %v24, %v24
  %v103 = vmul.f32 %v25, %v25
  %v104 = vmul.f32 %v26, %v26
  %v105 = vmul.f32 %v27, %v27
  %v106 = vmul.f32 %v28, %v28
  %v107 = vmul.f32 %v29, %v29
  %v108 = vsel %vm43, %v100, 0.0
  %109 = vadd.xlane.f32.xlu0 %v108
  %v110 = vpop.xlane.xlu0 %109
  %v111 = vsel %vm43, %v101, 0.0
  %112 = vadd.xlane.f32.xlu0 %v111
  %v113 = vpop.xlane.xlu0 %112
  %v114 = vsel %vm43, %v102, 0.0
  %115 = vadd.xlane.f32.xlu0 %v114
  %v116 = vpop.xlane.xlu0 %115
  %v117 = vsel %vm43, %v103, 0.0
  %118 = vadd.xlane.f32.xlu0 %v117
  %v119 = vpop.xlane.xlu0 %118
  %v120 = vsel %vm43, %v104, 0.0
  %121 = vadd.xlane.f32.xlu0 %v120
  %v122 = vpop.xlane.xlu0 %121
  %v123 = vsel %vm43, %v105, 0.0
  %124 = vadd.xlane.f32.xlu0 %v123
  %v125 = vpop.xlane.xlu0 %124
  %v126 = vsel %vm43, %v106, 0.0
  %127 = vadd.xlane.f32.xlu0 %v126
  %v128 = vpop.xlane.xlu0 %127
  %v129 = vsel %vm43, %v107, 0.0
  %130 = vadd.xlane.f32.xlu0 %v129
  %v131 = vpop.xlane.xlu0 %130
  %v139 = vlaneseq
  %v140 = vand.u32 %v139, 127
  %v141 = vperm.slane %v81, %v140
  %v142 = vperm.slane %v84, %v140
  %v143 = vperm.slane %v87, %v140
  %v144 = vperm.slane %v90, %v140
  %v145 = vperm.slane %v93, %v140
  %v146 = vperm.slane %v96, %v140
  %v147 = vperm.slane %v99, %v140
  %vm148 = vcmask 1041409
  %v149 = vsel %vm148, %v142, %v141
  %vm150 = vcmask 1042434
  %v151 = vsel %vm150, %v143, %v149
  %vm152 = vcmask 1043459
  %v153 = vsel %vm152, %v144, %v151
  %vm154 = vcmask 1044484
  %v155 = vsel %vm154, %v145, %v153
  %vm156 = vcmask 1045509
  %v157 = vsel %vm156, %v146, %v155
  %vm158 = vcmask 1046534
  %v159 = vsel %vm158, %v147, %v157
  %v162 = vperm.slane %v78, %v140
  %vm164 = vcmask 1046528
  %v165 = vsel %vm164, %v159, %v162
  %v173 = vperm.slane %v113, %v140
  %v174 = vperm.slane %v116, %v140
  %v175 = vperm.slane %v119, %v140
  %v176 = vperm.slane %v122, %v140
  %v177 = vperm.slane %v125, %v140
  %v178 = vperm.slane %v128, %v140
  %v179 = vperm.slane %v131, %v140
  %v180 = vsel %vm148, %v174, %v173
  %v181 = vsel %vm150, %v175, %v180
  %v182 = vsel %vm152, %v176, %v181
  %v183 = vsel %vm154, %v177, %v182
  %v184 = vsel %vm156, %v178, %v183
  %v185 = vsel %vm158, %v179, %v184
  %v188 = vperm.slane %v110, %v140
  %v190 = vsel %vm164, %v185, %v188
  %v191 = vmul.f32 %v14, %v15
  %v192 = vmul.f32 %v15, %v16
  %v193 = vmul.f32 %v16, %v17
  %v194 = vmul.f32 %v17, %v18
  %v195 = vmul.f32 %v18, %v19
  %v196 = vmul.f32 %v19, %v20
  %v197 = vmul.f32 %v20, %v21
  %v198 = vmul.f32 %v21, %v14
  %v199 = vsel %vm43, %v191, 0.0
  %200 = vadd.xlane.f32.xlu0 %v199
  %v201 = vpop.xlane.xlu0 %200
  %v202 = vsel %vm43, %v192, 0.0
  %203 = vadd.xlane.f32.xlu0 %v202
  %v204 = vpop.xlane.xlu0 %203
  %v205 = vsel %vm43, %v193, 0.0
  %206 = vadd.xlane.f32.xlu0 %v205
  %v207 = vpop.xlane.xlu0 %206
  %v208 = vsel %vm43, %v194, 0.0
  %209 = vadd.xlane.f32.xlu0 %v208
  %v210 = vpop.xlane.xlu0 %209
  %v211 = vsel %vm43, %v195, 0.0
  %212 = vadd.xlane.f32.xlu0 %v211
  %v213 = vpop.xlane.xlu0 %212
  %v214 = vsel %vm43, %v196, 0.0
  %215 = vadd.xlane.f32.xlu0 %v214
  %v216 = vpop.xlane.xlu0 %215
  %v217 = vsel %vm43, %v197, 0.0
  %218 = vadd.xlane.f32.xlu0 %v217
  %v219 = vpop.xlane.xlu0 %218
  %v220 = vsel %vm43, %v198, 0.0
  %221 = vadd.xlane.f32.xlu0 %v220
  %v222 = vpop.xlane.xlu0 %221
  %v223 = vmul.f32 %v22, %v23
  %v224 = vmul.f32 %v23, %v24
  %v225 = vmul.f32 %v24, %v25
  %v226 = vmul.f32 %v25, %v26
  %v227 = vmul.f32 %v26, %v27
  %v228 = vmul.f32 %v27, %v28
  %v229 = vmul.f32 %v28, %v29
  %v230 = vmul.f32 %v29, %v22
  %v231 = vsel %vm43, %v223, 0.0
  %232 = vadd.xlane.f32.xlu0 %v231
  %v233 = vpop.xlane.xlu0 %232
  %v234 = vsel %vm43, %v224, 0.0
  %235 = vadd.xlane.f32.xlu0 %v234
  %v236 = vpop.xlane.xlu0 %235
  %v237 = vsel %vm43, %v225, 0.0
  %238 = vadd.xlane.f32.xlu0 %v237
  %v239 = vpop.xlane.xlu0 %238
  %v240 = vsel %vm43, %v226, 0.0
  %241 = vadd.xlane.f32.xlu0 %v240
  %v242 = vpop.xlane.xlu0 %241
  %v243 = vsel %vm43, %v227, 0.0
  %244 = vadd.xlane.f32.xlu0 %v243
  %v245 = vpop.xlane.xlu0 %244
  %v246 = vsel %vm43, %v228, 0.0
  %247 = vadd.xlane.f32.xlu0 %v246
  %v248 = vpop.xlane.xlu0 %247
  %v249 = vsel %vm43, %v229, 0.0
  %250 = vadd.xlane.f32.xlu0 %v249
  %v251 = vpop.xlane.xlu0 %250
  %v252 = vsel %vm43, %v230, 0.0
  %253 = vadd.xlane.f32.xlu0 %v252
  %v254 = vpop.xlane.xlu0 %253
  %v255 = vadd.f32 %v78, %v110
  %v256 = vadd.f32 %v81, %v113
  %v257 = vadd.f32 %v84, %v116
  %v258 = vadd.f32 %v87, %v119
  %v259 = vadd.f32 %v90, %v122
  %v260 = vadd.f32 %v93, %v125
  %v261 = vadd.f32 %v96, %v128
  %v262 = vadd.f32 %v99, %v131
  %v263 = vmul.f32 %v46, 2.0
  %v264 = vmul.f32 %v49, 2.0
  %v265 = vmul.f32 %v52, 2.0
  %v266 = vmul.f32 %v55, 2.0
  %v267 = vmul.f32 %v58, 2.0
  %v268 = vmul.f32 %v61, 2.0
  %v269 = vmul.f32 %v64, 2.0
  %v270 = vmul.f32 %v67, 2.0
  %v271 = vsub.f32 %v255, %v263
  %v272 = vsub.f32 %v256, %v264
  %v273 = vsub.f32 %v257, %v265
  %v274 = vsub.f32 %v258, %v266
  %v275 = vsub.f32 %v259, %v267
  %v276 = vsub.f32 %v260, %v268
  %v277 = vsub.f32 %v261, %v269
  %v278 = vsub.f32 %v262, %v270
  %v287 = vperm.slane %v271, %v140
  %v288 = vperm.slane %v272, %v140
  %v289 = vperm.slane %v273, %v140
  %v290 = vperm.slane %v274, %v140
  %v291 = vperm.slane %v275, %v140
  %v292 = vperm.slane %v276, %v140
  %v293 = vperm.slane %v277, %v140
  %v294 = vperm.slane %v278, %v140
  %v295 = vsel %vm148, %v288, %v287
  %v296 = vsel %vm150, %v289, %v295
  %v297 = vsel %vm152, %v290, %v296
  %v298 = vsel %vm154, %v291, %v297
  %v299 = vsel %vm156, %v292, %v298
  %v300 = vsel %vm158, %v293, %v299
  %vm301 = vcmask 1047559
  %v302 = vsel %vm301, %v294, %v300
  %304 = vxpose.xlu0.b32.start [1/16] %v302, 128
  %305 = vxpose.xlu0.b32.cont [2/16] 0.0, 128
  %306 = vxpose.xlu0.b32.cont [3/16] 0.0, 128
  %307 = vxpose.xlu0.b32.cont [4/16] 0.0, 128
  %308 = vxpose.xlu0.b32.cont [5/16] 0.0, 128
  %309 = vxpose.xlu0.b32.cont [6/16] 0.0, 128
  %310 = vxpose.xlu0.b32.cont [7/16] 0.0, 128
  %311 = vxpose.xlu0.b32.cont [8/16] 0.0, 128
  %312 = vxpose.xlu0.b32.cont [9/16] 0.0, 128
  %313 = vxpose.xlu0.b32.cont [10/16] 0.0, 128
  %314 = vxpose.xlu0.b32.cont [11/16] 0.0, 128
  %315 = vxpose.xlu0.b32.cont [12/16] 0.0, 128
  %316 = vxpose.xlu0.b32.cont [13/16] 0.0, 128
  %317 = vxpose.xlu0.b32.cont [14/16] 0.0, 128
  %318 = vxpose.xlu0.b32.cont [15/16] 0.0, 128
  %319 = vxpose.xlu0.b32.end [16/16] 0.0, 128
  %v320 = vpop.trf.xlu0
  %v321 = vpop.trf.xlu0
  %v322 = vpop.trf.xlu0
  %v323 = vpop.trf.xlu0
  %v324 = vpop.trf.xlu0
  %v325 = vpop.trf.xlu0
  %v326 = vpop.trf.xlu0
  %v327 = vpop.trf.xlu0
  %v328 = vpop.trf.xlu0
  %v329 = vpop.trf.xlu0
  %v330 = vpop.trf.xlu0
  %v331 = vpop.trf.xlu0
  %v332 = vpop.trf.xlu0
  %v333 = vpop.trf.xlu0
  %v334 = vpop.trf.xlu0
  %v335 = vpop.trf.xlu0
  %v336 = vmul.f32 %v78, %v110
  %v337 = vmul.f32 %v81, %v113
  %v338 = vmul.f32 %v84, %v116
  %v339 = vmul.f32 %v87, %v119
  %v340 = vmul.f32 %v90, %v122
  %v341 = vmul.f32 %v93, %v125
  %v342 = vmul.f32 %v96, %v128
  %v343 = vmul.f32 %v99, %v131
  %v344 = vmax.f32 %v336, 1e-16
  %v345 = vmax.f32 %v337, 1e-16
  %v346 = vmax.f32 %v338, 1e-16
  %v347 = vmax.f32 %v339, 1e-16
  %v348 = vmax.f32 %v340, 1e-16
  %v349 = vmax.f32 %v341, 1e-16
  %v350 = vmax.f32 %v342, 1e-16
  %v351 = vmax.f32 %v343, 1e-16
  %v352 = vrsqrt.pop %v344
  %v353 = vmul.f32 %v352, %v344
  %v354 = vmul.f32 %v353, %v352
  %v355 = vmul.f32 0.5, %v354
  %v356 = vsub.f32 1.5, %v355
  %v357 = vmul.f32 %v352, %v356
  %vm358 = vweird.f32 %v344
  %vm359 = vweird.f32 %v352
  %vm360 = vmor %vm358, %vm359
  %v361 = vsel %vm360, %v352, %v357
  %v362 = vrsqrt.pop %v345
  %v363 = vmul.f32 %v362, %v345
  %v364 = vmul.f32 %v363, %v362
  %v365 = vmul.f32 0.5, %v364
  %v366 = vsub.f32 1.5, %v365
  %v367 = vmul.f32 %v362, %v366
  %vm368 = vweird.f32 %v345
  %vm369 = vweird.f32 %v362
  %vm370 = vmor %vm368, %vm369
  %v371 = vsel %vm370, %v362, %v367
  %v372 = vrsqrt.pop %v346
  %v373 = vmul.f32 %v372, %v346
  %v374 = vmul.f32 %v373, %v372
  %v375 = vmul.f32 0.5, %v374
  %v376 = vsub.f32 1.5, %v375
  %v377 = vmul.f32 %v372, %v376
  %vm378 = vweird.f32 %v346
  %vm379 = vweird.f32 %v372
  %vm380 = vmor %vm378, %vm379
  %v381 = vsel %vm380, %v372, %v377
  %v382 = vrsqrt.pop %v347
  %v383 = vmul.f32 %v382, %v347
  %v384 = vmul.f32 %v383, %v382
  %v385 = vmul.f32 0.5, %v384
  %v386 = vsub.f32 1.5, %v385
  %v387 = vmul.f32 %v382, %v386
  %vm388 = vweird.f32 %v347
  %vm389 = vweird.f32 %v382
  %vm390 = vmor %vm388, %vm389
  %v391 = vsel %vm390, %v382, %v387
  %v392 = vrsqrt.pop %v348
  %v393 = vmul.f32 %v392, %v348
  %v394 = vmul.f32 %v393, %v392
  %v395 = vmul.f32 0.5, %v394
  %v396 = vsub.f32 1.5, %v395
  %v397 = vmul.f32 %v392, %v396
  %vm398 = vweird.f32 %v348
  %vm399 = vweird.f32 %v392
  %vm400 = vmor %vm398, %vm399
  %v401 = vsel %vm400, %v392, %v397
  %v402 = vrsqrt.pop %v349
  %v403 = vmul.f32 %v402, %v349
  %v404 = vmul.f32 %v403, %v402
  %v405 = vmul.f32 0.5, %v404
  %v406 = vsub.f32 1.5, %v405
  %v407 = vmul.f32 %v402, %v406
  %vm408 = vweird.f32 %v349
  %vm409 = vweird.f32 %v402
  %vm410 = vmor %vm408, %vm409
  %v411 = vsel %vm410, %v402, %v407
  %v412 = vrsqrt.pop %v350
  %v413 = vmul.f32 %v412, %v350
  %v414 = vmul.f32 %v413, %v412
  %v415 = vmul.f32 0.5, %v414
  %v416 = vsub.f32 1.5, %v415
  %v417 = vmul.f32 %v412, %v416
  %vm418 = vweird.f32 %v350
  %vm419 = vweird.f32 %v412
  %vm420 = vmor %vm418, %vm419
  %v421 = vsel %vm420, %v412, %v417
  %v422 = vrsqrt.pop %v351
  %v423 = vmul.f32 %v422, %v351
  %v424 = vmul.f32 %v423, %v422
  %v425 = vmul.f32 0.5, %v424
  %v426 = vsub.f32 1.5, %v425
  %v427 = vmul.f32 %v422, %v426
  %vm428 = vweird.f32 %v351
  %vm429 = vweird.f32 %v422
  %vm430 = vmor %vm428, %vm429
  %v431 = vsel %vm430, %v422, %v427
  %v432 = vmul.f32 %v46, %v361
  %v433 = vmul.f32 %v49, %v371
  %v434 = vmul.f32 %v52, %v381
  %v435 = vmul.f32 %v55, %v391
  %v436 = vmul.f32 %v58, %v401
  %v437 = vmul.f32 %v61, %v411
  %v438 = vmul.f32 %v64, %v421
  %v439 = vmul.f32 %v67, %v431
  %v448 = vperm.slane %v432, %v140
  %v449 = vperm.slane %v433, %v140
  %v450 = vperm.slane %v434, %v140
  %v451 = vperm.slane %v435, %v140
  %v452 = vperm.slane %v436, %v140
  %v453 = vperm.slane %v437, %v140
  %v454 = vperm.slane %v438, %v140
  %v455 = vperm.slane %v439, %v140
  %v456 = vsel %vm148, %v449, %v448
  %v457 = vsel %vm150, %v450, %v456
  %v458 = vsel %vm152, %v451, %v457
  %v459 = vsel %vm154, %v452, %v458
  %v460 = vsel %vm156, %v453, %v459
  %v461 = vsel %vm158, %v454, %v460
  %v462 = vsel %vm301, %v455, %v461
  %464 = vxpose.xlu0.b32.start [1/16] %v462, 128
  %465 = vxpose.xlu0.b32.cont [2/16] 0.0, 128
  %466 = vxpose.xlu0.b32.cont [3/16] 0.0, 128
  %467 = vxpose.xlu0.b32.cont [4/16] 0.0, 128
  %468 = vxpose.xlu0.b32.cont [5/16] 0.0, 128
  %469 = vxpose.xlu0.b32.cont [6/16] 0.0, 128
  %470 = vxpose.xlu0.b32.cont [7/16] 0.0, 128
  %471 = vxpose.xlu0.b32.cont [8/16] 0.0, 128
  %472 = vxpose.xlu0.b32.cont [9/16] 0.0, 128
  %473 = vxpose.xlu0.b32.cont [10/16] 0.0, 128
  %474 = vxpose.xlu0.b32.cont [11/16] 0.0, 128
  %475 = vxpose.xlu0.b32.cont [12/16] 0.0, 128
  %476 = vxpose.xlu0.b32.cont [13/16] 0.0, 128
  %477 = vxpose.xlu0.b32.cont [14/16] 0.0, 128
  %478 = vxpose.xlu0.b32.cont [15/16] 0.0, 128
  %479 = vxpose.xlu0.b32.end [16/16] 0.0, 128
  %v480 = vpop.trf.xlu0
  %v481 = vpop.trf.xlu0
  %v482 = vpop.trf.xlu0
  %v483 = vpop.trf.xlu0
  %v484 = vpop.trf.xlu0
  %v485 = vpop.trf.xlu0
  %v486 = vpop.trf.xlu0
  %v487 = vpop.trf.xlu0
  %v488 = vpop.trf.xlu0
  %v489 = vpop.trf.xlu0
  %v490 = vpop.trf.xlu0
  %v491 = vpop.trf.xlu0
  %v492 = vpop.trf.xlu0
  %v493 = vpop.trf.xlu0
  %v494 = vpop.trf.xlu0
  %v495 = vpop.trf.xlu0
  %v497 = vperm.slane %v165, 0
  %v498 = vlaneseq
  %v499 = vshrl.u32 %v498, 7
  %501 = vset.pattern.permute.xlu0 %v499
  %502 = vperm.xlu0 %501, %v497
  %v503 = vpop.permute.xlu0 %502
  %v504 = vperm.slane %v165, 1
  %v505 = vlaneseq
  %v506 = vshrl.u32 %v505, 7
  %508 = vset.pattern.permute.xlu0 %v506
  %509 = vperm.xlu0 %508, %v504
  %v510 = vpop.permute.xlu0 %509
  %v511 = vperm.slane %v165, 2
  %v512 = vlaneseq
  %v513 = vshrl.u32 %v512, 7
  %515 = vset.pattern.permute.xlu0 %v513
  %516 = vperm.xlu0 %515, %v511
  %v517 = vpop.permute.xlu0 %516
  %v518 = vperm.slane %v165, 3
  %v519 = vlaneseq
  %v520 = vshrl.u32 %v519, 7
  %522 = vset.pattern.permute.xlu0 %v520
  %523 = vperm.xlu0 %522, %v518
  %v524 = vpop.permute.xlu0 %523
  %v525 = vperm.slane %v165, 4
  %v526 = vlaneseq
  %v527 = vshrl.u32 %v526, 7
  %529 = vset.pattern.permute.xlu0 %v527
  %530 = vperm.xlu0 %529, %v525
  %v531 = vpop.permute.xlu0 %530
  %v532 = vperm.slane %v165, 5
  %v533 = vlaneseq
  %v534 = vshrl.u32 %v533, 7
  %536 = vset.pattern.permute.xlu0 %v534
  %537 = vperm.xlu0 %536, %v532
  %v538 = vpop.permute.xlu0 %537
  %v539 = vperm.slane %v165, 6
  %v540 = vlaneseq
  %v541 = vshrl.u32 %v540, 7
  %543 = vset.pattern.permute.xlu0 %v541
  %544 = vperm.xlu0 %543, %v539
  %v545 = vpop.permute.xlu0 %544
  %v546 = vperm.slane %v165, 7
  %v547 = vlaneseq
  %v548 = vshrl.u32 %v547, 7
  %550 = vset.pattern.permute.xlu0 %v548
  %551 = vperm.xlu0 %550, %v546
  %v552 = vpop.permute.xlu0 %551
  %v561 = vmul.f32 %v78, %v503
  %v562 = vmul.f32 %v81, %v510
  %v563 = vmul.f32 %v84, %v517
  %v564 = vmul.f32 %v87, %v524
  %v565 = vmul.f32 %v90, %v531
  %v566 = vmul.f32 %v93, %v538
  %v567 = vmul.f32 %v96, %v545
  %v568 = vmul.f32 %v99, %v552
  %v569 = vmax.f32 %v561, 1e-12
  %v570 = vmax.f32 %v562, 1e-12
  %v571 = vmax.f32 %v563, 1e-12
  %v572 = vmax.f32 %v564, 1e-12
  %v573 = vmax.f32 %v565, 1e-12
  %v574 = vmax.f32 %v566, 1e-12
  %v575 = vmax.f32 %v567, 1e-12
  %v576 = vmax.f32 %v568, 1e-12
  %v577 = vrsqrt.pop %v569
  %v578 = vmul.f32 %v577, %v569
  %v579 = vmul.f32 %v578, %v577
  %v580 = vmul.f32 0.5, %v579
  %v581 = vsub.f32 1.5, %v580
  %v582 = vmul.f32 %v577, %v581
  %vm583 = vweird.f32 %v569
  %vm584 = vweird.f32 %v577
  %vm585 = vmor %vm583, %vm584
  %v586 = vsel %vm585, %v577, %v582
  %v587 = vrsqrt.pop %v570
  %v588 = vmul.f32 %v587, %v570
  %v589 = vmul.f32 %v588, %v587
  %v590 = vmul.f32 0.5, %v589
  %v591 = vsub.f32 1.5, %v590
  %v592 = vmul.f32 %v587, %v591
  %vm593 = vweird.f32 %v570
  %vm594 = vweird.f32 %v587
  %vm595 = vmor %vm593, %vm594
  %v596 = vsel %vm595, %v587, %v592
  %v597 = vrsqrt.pop %v571
  %v598 = vmul.f32 %v597, %v571
  %v599 = vmul.f32 %v598, %v597
  %v600 = vmul.f32 0.5, %v599
  %v601 = vsub.f32 1.5, %v600
  %v602 = vmul.f32 %v597, %v601
  %vm603 = vweird.f32 %v571
  %vm604 = vweird.f32 %v597
  %vm605 = vmor %vm603, %vm604
  %v606 = vsel %vm605, %v597, %v602
  %v607 = vrsqrt.pop %v572
  %v608 = vmul.f32 %v607, %v572
  %v609 = vmul.f32 %v608, %v607
  %v610 = vmul.f32 0.5, %v609
  %v611 = vsub.f32 1.5, %v610
  %v612 = vmul.f32 %v607, %v611
  %vm613 = vweird.f32 %v572
  %vm614 = vweird.f32 %v607
  %vm615 = vmor %vm613, %vm614
  %v616 = vsel %vm615, %v607, %v612
  %v617 = vrsqrt.pop %v573
  %v618 = vmul.f32 %v617, %v573
  %v619 = vmul.f32 %v618, %v617
  %v620 = vmul.f32 0.5, %v619
  %v621 = vsub.f32 1.5, %v620
  %v622 = vmul.f32 %v617, %v621
  %vm623 = vweird.f32 %v573
  %vm624 = vweird.f32 %v617
  %vm625 = vmor %vm623, %vm624
  %v626 = vsel %vm625, %v617, %v622
  %v627 = vrsqrt.pop %v574
  %v628 = vmul.f32 %v627, %v574
  %v629 = vmul.f32 %v628, %v627
  %v630 = vmul.f32 0.5, %v629
  %v631 = vsub.f32 1.5, %v630
  %v632 = vmul.f32 %v627, %v631
  %vm633 = vweird.f32 %v574
  %vm634 = vweird.f32 %v627
  %vm635 = vmor %vm633, %vm634
  %v636 = vsel %vm635, %v627, %v632
  %v637 = vrsqrt.pop %v575
  %v638 = vmul.f32 %v637, %v575
  %v639 = vmul.f32 %v638, %v637
  %v640 = vmul.f32 0.5, %v639
  %v641 = vsub.f32 1.5, %v640
  %v642 = vmul.f32 %v637, %v641
  %vm643 = vweird.f32 %v575
  %vm644 = vweird.f32 %v637
  %vm645 = vmor %vm643, %vm644
  %v646 = vsel %vm645, %v637, %v642
  %v647 = vrsqrt.pop %v576
  %v648 = vmul.f32 %v647, %v576
  %v649 = vmul.f32 %v648, %v647
  %v650 = vmul.f32 0.5, %v649
  %v651 = vsub.f32 1.5, %v650
  %v652 = vmul.f32 %v647, %v651
  %vm653 = vweird.f32 %v576
  %vm654 = vweird.f32 %v647
  %vm655 = vmor %vm653, %vm654
  %v656 = vsel %vm655, %v647, %v652
  %v657 = vmul.f32 %v201, %v586
  %v658 = vmul.f32 %v204, %v596
  %v659 = vmul.f32 %v207, %v606
  %v660 = vmul.f32 %v210, %v616
  %v661 = vmul.f32 %v213, %v626
  %v662 = vmul.f32 %v216, %v636
  %v663 = vmul.f32 %v219, %v646
  %v664 = vmul.f32 %v222, %v656
  %673 = vset.pattern.permute.xlu0 0
  %674 = vperm.xlu0 %673, %v657
  %v675 = vpop.permute.xlu0 %674
  %676 = vset.pattern.permute.xlu0 0
  %677 = vperm.xlu0 %676, %v658
  %v678 = vpop.permute.xlu0 %677
  %679 = vset.pattern.permute.xlu0 0
  %680 = vperm.xlu0 %679, %v659
  %v681 = vpop.permute.xlu0 %680
  %682 = vset.pattern.permute.xlu0 0
  %683 = vperm.xlu0 %682, %v660
  %v684 = vpop.permute.xlu0 %683
  %685 = vset.pattern.permute.xlu0 0
  %686 = vperm.xlu0 %685, %v661
  %v687 = vpop.permute.xlu0 %686
  %688 = vset.pattern.permute.xlu0 0
  %689 = vperm.xlu0 %688, %v662
  %v690 = vpop.permute.xlu0 %689
  %691 = vset.pattern.permute.xlu0 0
  %692 = vperm.xlu0 %691, %v663
  %v693 = vpop.permute.xlu0 %692
  %694 = vset.pattern.permute.xlu0 0
  %695 = vperm.xlu0 %694, %v664
  %v696 = vpop.permute.xlu0 %695
  %v697 = vperm.slane %v675, %v140
  %v698 = vperm.slane %v678, %v140
  %v699 = vperm.slane %v681, %v140
  %v700 = vperm.slane %v684, %v140
  %v701 = vperm.slane %v687, %v140
  %v702 = vperm.slane %v690, %v140
  %v703 = vperm.slane %v693, %v140
  %v704 = vperm.slane %v696, %v140
  %v705 = vsel %vm148, %v698, %v697
  %v706 = vsel %vm150, %v699, %v705
  %v707 = vsel %vm152, %v700, %v706
  %v708 = vsel %vm154, %v701, %v707
  %v709 = vsel %vm156, %v702, %v708
  %v710 = vsel %vm158, %v703, %v709
  %v711 = vsel %vm301, %v704, %v710
  %713 = vxpose.xlu0.b32.start [1/16] %v711, 128
  %714 = vxpose.xlu0.b32.cont [2/16] 0.0, 128
  %715 = vxpose.xlu0.b32.cont [3/16] 0.0, 128
  %716 = vxpose.xlu0.b32.cont [4/16] 0.0, 128
  %717 = vxpose.xlu0.b32.cont [5/16] 0.0, 128
  %718 = vxpose.xlu0.b32.cont [6/16] 0.0, 128
  %719 = vxpose.xlu0.b32.cont [7/16] 0.0, 128
  %720 = vxpose.xlu0.b32.cont [8/16] 0.0, 128
  %721 = vxpose.xlu0.b32.cont [9/16] 0.0, 128
  %722 = vxpose.xlu0.b32.cont [10/16] 0.0, 128
  %723 = vxpose.xlu0.b32.cont [11/16] 0.0, 128
  %724 = vxpose.xlu0.b32.cont [12/16] 0.0, 128
  %725 = vxpose.xlu0.b32.cont [13/16] 0.0, 128
  %726 = vxpose.xlu0.b32.cont [14/16] 0.0, 128
  %727 = vxpose.xlu0.b32.cont [15/16] 0.0, 128
  %728 = vxpose.xlu0.b32.end [16/16] 0.0, 128
  %v729 = vpop.trf.xlu0
  %v730 = vpop.trf.xlu0
  %v731 = vpop.trf.xlu0
  %v732 = vpop.trf.xlu0
  %v733 = vpop.trf.xlu0
  %v734 = vpop.trf.xlu0
  %v735 = vpop.trf.xlu0
  %v736 = vpop.trf.xlu0
  %v737 = vpop.trf.xlu0
  %v738 = vpop.trf.xlu0
  %v739 = vpop.trf.xlu0
  %v740 = vpop.trf.xlu0
  %v741 = vpop.trf.xlu0
  %v742 = vpop.trf.xlu0
  %v743 = vpop.trf.xlu0
  %v744 = vpop.trf.xlu0
  %v746 = vperm.slane %v190, 0
  %v747 = vlaneseq
  %v748 = vshrl.u32 %v747, 7
  %750 = vset.pattern.permute.xlu0 %v748
  %751 = vperm.xlu0 %750, %v746
  %v752 = vpop.permute.xlu0 %751
  %v753 = vperm.slane %v190, 1
  %v754 = vlaneseq
  %v755 = vshrl.u32 %v754, 7
  %757 = vset.pattern.permute.xlu0 %v755
  %758 = vperm.xlu0 %757, %v753
  %v759 = vpop.permute.xlu0 %758
  %v760 = vperm.slane %v190, 2
  %v761 = vlaneseq
  %v762 = vshrl.u32 %v761, 7
  %764 = vset.pattern.permute.xlu0 %v762
  %765 = vperm.xlu0 %764, %v760
  %v766 = vpop.permute.xlu0 %765
  %v767 = vperm.slane %v190, 3
  %v768 = vlaneseq
  %v769 = vshrl.u32 %v768, 7
  %771 = vset.pattern.permute.xlu0 %v769
  %772 = vperm.xlu0 %771, %v767
  %v773 = vpop.permute.xlu0 %772
  %v774 = vperm.slane %v190, 4
  %v775 = vlaneseq
  %v776 = vshrl.u32 %v775, 7
  %778 = vset.pattern.permute.xlu0 %v776
  %779 = vperm.xlu0 %778, %v774
  %v780 = vpop.permute.xlu0 %779
  %v781 = vperm.slane %v190, 5
  %v782 = vlaneseq
  %v783 = vshrl.u32 %v782, 7
  %785 = vset.pattern.permute.xlu0 %v783
  %786 = vperm.xlu0 %785, %v781
  %v787 = vpop.permute.xlu0 %786
  %v788 = vperm.slane %v190, 6
  %v789 = vlaneseq
  %v790 = vshrl.u32 %v789, 7
  %792 = vset.pattern.permute.xlu0 %v790
  %793 = vperm.xlu0 %792, %v788
  %v794 = vpop.permute.xlu0 %793
  %v795 = vperm.slane %v190, 7
  %v796 = vlaneseq
  %v797 = vshrl.u32 %v796, 7
  %799 = vset.pattern.permute.xlu0 %v797
  %800 = vperm.xlu0 %799, %v795
  %v801 = vpop.permute.xlu0 %800
  %v810 = vmul.f32 %v110, %v752
  %v811 = vmul.f32 %v113, %v759
  %v812 = vmul.f32 %v116, %v766
  %v813 = vmul.f32 %v119, %v773
  %v814 = vmul.f32 %v122, %v780
  %v815 = vmul.f32 %v125, %v787
  %v816 = vmul.f32 %v128, %v794
  %v817 = vmul.f32 %v131, %v801
  %v818 = vmax.f32 %v810, 1e-12
  %v819 = vmax.f32 %v811, 1e-12
  %v820 = vmax.f32 %v812, 1e-12
  %v821 = vmax.f32 %v813, 1e-12
  %v822 = vmax.f32 %v814, 1e-12
  %v823 = vmax.f32 %v815, 1e-12
  %v824 = vmax.f32 %v816, 1e-12
  %v825 = vmax.f32 %v817, 1e-12
  %v826 = vrsqrt.pop %v818
  %v827 = vmul.f32 %v826, %v818
  %v828 = vmul.f32 %v827, %v826
  %v829 = vmul.f32 0.5, %v828
  %v830 = vsub.f32 1.5, %v829
  %v831 = vmul.f32 %v826, %v830
  %vm832 = vweird.f32 %v818
  %vm833 = vweird.f32 %v826
  %vm834 = vmor %vm832, %vm833
  %v835 = vsel %vm834, %v826, %v831
  %v836 = vrsqrt.pop %v819
  %v837 = vmul.f32 %v836, %v819
  %v838 = vmul.f32 %v837, %v836
  %v839 = vmul.f32 0.5, %v838
  %v840 = vsub.f32 1.5, %v839
  %v841 = vmul.f32 %v836, %v840
  %vm842 = vweird.f32 %v819
  %vm843 = vweird.f32 %v836
  %vm844 = vmor %vm842, %vm843
  %v845 = vsel %vm844, %v836, %v841
  %v846 = vrsqrt.pop %v820
  %v847 = vmul.f32 %v846, %v820
  %v848 = vmul.f32 %v847, %v846
  %v849 = vmul.f32 0.5, %v848
  %v850 = vsub.f32 1.5, %v849
  %v851 = vmul.f32 %v846, %v850
  %vm852 = vweird.f32 %v820
  %vm853 = vweird.f32 %v846
  %vm854 = vmor %vm852, %vm853
  %v855 = vsel %vm854, %v846, %v851
  %v856 = vrsqrt.pop %v821
  %v857 = vmul.f32 %v856, %v821
  %v858 = vmul.f32 %v857, %v856
  %v859 = vmul.f32 0.5, %v858
  %v860 = vsub.f32 1.5, %v859
  %v861 = vmul.f32 %v856, %v860
  %vm862 = vweird.f32 %v821
  %vm863 = vweird.f32 %v856
  %vm864 = vmor %vm862, %vm863
  %v865 = vsel %vm864, %v856, %v861
  %v866 = vrsqrt.pop %v822
  %v867 = vmul.f32 %v866, %v822
  %v868 = vmul.f32 %v867, %v866
  %v869 = vmul.f32 0.5, %v868
  %v870 = vsub.f32 1.5, %v869
  %v871 = vmul.f32 %v866, %v870
  %vm872 = vweird.f32 %v822
  %vm873 = vweird.f32 %v866
  %vm874 = vmor %vm872, %vm873
  %v875 = vsel %vm874, %v866, %v871
  %v876 = vrsqrt.pop %v823
  %v877 = vmul.f32 %v876, %v823
  %v878 = vmul.f32 %v877, %v876
  %v879 = vmul.f32 0.5, %v878
  %v880 = vsub.f32 1.5, %v879
  %v881 = vmul.f32 %v876, %v880
  %vm882 = vweird.f32 %v823
  %vm883 = vweird.f32 %v876
  %vm884 = vmor %vm882, %vm883
  %v885 = vsel %vm884, %v876, %v881
  %v886 = vrsqrt.pop %v824
  %v887 = vmul.f32 %v886, %v824
  %v888 = vmul.f32 %v887, %v886
  %v889 = vmul.f32 0.5, %v888
  %v890 = vsub.f32 1.5, %v889
  %v891 = vmul.f32 %v886, %v890
  %vm892 = vweird.f32 %v824
  %vm893 = vweird.f32 %v886
  %vm894 = vmor %vm892, %vm893
  %v895 = vsel %vm894, %v886, %v891
  %v896 = vrsqrt.pop %v825
  %v897 = vmul.f32 %v896, %v825
  %v898 = vmul.f32 %v897, %v896
  %v899 = vmul.f32 0.5, %v898
  %v900 = vsub.f32 1.5, %v899
  %v901 = vmul.f32 %v896, %v900
  %vm902 = vweird.f32 %v825
  %vm903 = vweird.f32 %v896
  %vm904 = vmor %vm902, %vm903
  %v905 = vsel %vm904, %v896, %v901
  %v906 = vmul.f32 %v233, %v835
  %v907 = vmul.f32 %v236, %v845
  %v908 = vmul.f32 %v239, %v855
  %v909 = vmul.f32 %v242, %v865
  %v910 = vmul.f32 %v245, %v875
  %v911 = vmul.f32 %v248, %v885
  %v912 = vmul.f32 %v251, %v895
  %v913 = vmul.f32 %v254, %v905
  %922 = vset.pattern.permute.xlu0 0
  %923 = vperm.xlu0 %922, %v906
  %v924 = vpop.permute.xlu0 %923
  %925 = vset.pattern.permute.xlu0 0
  %926 = vperm.xlu0 %925, %v907
  %v927 = vpop.permute.xlu0 %926
  %928 = vset.pattern.permute.xlu0 0
  %929 = vperm.xlu0 %928, %v908
  %v930 = vpop.permute.xlu0 %929
  %931 = vset.pattern.permute.xlu0 0
  %932 = vperm.xlu0 %931, %v909
  %v933 = vpop.permute.xlu0 %932
  %934 = vset.pattern.permute.xlu0 0
  %935 = vperm.xlu0 %934, %v910
  %v936 = vpop.permute.xlu0 %935
  %937 = vset.pattern.permute.xlu0 0
  %938 = vperm.xlu0 %937, %v911
  %v939 = vpop.permute.xlu0 %938
  %940 = vset.pattern.permute.xlu0 0
  %941 = vperm.xlu0 %940, %v912
  %v942 = vpop.permute.xlu0 %941
  %943 = vset.pattern.permute.xlu0 0
  %944 = vperm.xlu0 %943, %v913
  %v945 = vpop.permute.xlu0 %944
  %v946 = vperm.slane %v924, %v140
  %v947 = vperm.slane %v927, %v140
  %v948 = vperm.slane %v930, %v140
  %v949 = vperm.slane %v933, %v140
  %v950 = vperm.slane %v936, %v140
  %v951 = vperm.slane %v939, %v140
  %v952 = vperm.slane %v942, %v140
  %v953 = vperm.slane %v945, %v140
  %v954 = vsel %vm148, %v947, %v946
  %v955 = vsel %vm150, %v948, %v954
  %v956 = vsel %vm152, %v949, %v955
  %v957 = vsel %vm154, %v950, %v956
  %v958 = vsel %vm156, %v951, %v957
  %v959 = vsel %vm158, %v952, %v958
  %v960 = vsel %vm301, %v953, %v959
  %962 = vxpose.xlu0.b32.start [1/16] %v960, 128
  %963 = vxpose.xlu0.b32.cont [2/16] 0.0, 128
  %964 = vxpose.xlu0.b32.cont [3/16] 0.0, 128
  %965 = vxpose.xlu0.b32.cont [4/16] 0.0, 128
  %966 = vxpose.xlu0.b32.cont [5/16] 0.0, 128
  %967 = vxpose.xlu0.b32.cont [6/16] 0.0, 128
  %968 = vxpose.xlu0.b32.cont [7/16] 0.0, 128
  %969 = vxpose.xlu0.b32.cont [8/16] 0.0, 128
  %970 = vxpose.xlu0.b32.cont [9/16] 0.0, 128
  %971 = vxpose.xlu0.b32.cont [10/16] 0.0, 128
  %972 = vxpose.xlu0.b32.cont [11/16] 0.0, 128
  %973 = vxpose.xlu0.b32.cont [12/16] 0.0, 128
  %974 = vxpose.xlu0.b32.cont [13/16] 0.0, 128
  %975 = vxpose.xlu0.b32.cont [14/16] 0.0, 128
  %976 = vxpose.xlu0.b32.cont [15/16] 0.0, 128
  %977 = vxpose.xlu0.b32.end [16/16] 0.0, 128
  %v978 = vpop.trf.xlu0
  %v979 = vpop.trf.xlu0
  %v980 = vpop.trf.xlu0
  %v981 = vpop.trf.xlu0
  %v982 = vpop.trf.xlu0
  %v983 = vpop.trf.xlu0
  %v984 = vpop.trf.xlu0
  %v985 = vpop.trf.xlu0
  %v986 = vpop.trf.xlu0
  %v987 = vpop.trf.xlu0
  %v988 = vpop.trf.xlu0
  %v989 = vpop.trf.xlu0
  %v990 = vpop.trf.xlu0
  %v991 = vpop.trf.xlu0
  %v992 = vpop.trf.xlu0
  %v993 = vpop.trf.xlu0
  %v994 = vmax.f32 %v32, 0.0
  %v995 = vmul.f32 %v32, %v33
  %v996 = vsub.f32 %v994, %v995
  %v997 = vand.u32 2147483647, %v32
  %v998 = vsub.f32 0.0, %v997
  %v999 = vmul.f32 %v998, 1.442695
  %v1000 = vpow.pop %v999
  %v1001 = vadd.f32 %v1000, 1.0
  %v1002 = vlog2.pop %v1001
  %v1003 = vmul.f32 %v1002, 0.6931472
  %v1004 = vadd.f32 %v996, %v1003
  %vm1005 = vcmp.gt.f32.partialorder %v30, 0.5
  %v1006 = vsel %vm1005, %v320, 0.0
  %vm1007 = vcmask 58368
  %1008 = vst.msk [vmem:[%s3] sm:$0x3] %vm1007, %v1006
  %v1009 = vsub.f32 1.0, %v480
  %v1010 = vsel %vm1005, %v1009, 0.0
  %s1011 = scalar_lea.vmem %s3, 2
  %1012 = vst.msk [vmem:[%s1011] sm:$0x3] %vm1007, %v1010
  %vm1013 = vcmp.gt.f32.partialorder %v34, 0.5
  %v1014 = vsel %vm1013, %v1004, 0.0
  %s1015 = scalar_lea.vmem %s3, 4
  %1016 = vst.msk [vmem:[%s1015] sm:$0x3] %vm1007, %v1014
  %vm1017 = vcmp.gt.f32.partialorder %v31, 0.5
  %v1018 = vsel %vm1017, %v729, 0.0
  %s1019 = scalar_lea.vmem %s3, 6
  %1020 = vst.msk [vmem:[%s1019] sm:$0x3] %vm1007, %v1018
  %v1021 = vsel %vm1017, %v978, 0.0
  %s1022 = scalar_lea.vmem %s3, 8
  %1023 = vst.msk [vmem:[%s1022] sm:$0x3] %vm1007, %v1021
  // Predicated region
  $region14: #{sen_embedding_loss.1} parent=0 // pred_check
    _
  $region15: #{sen_embedding_loss.1} parent=0 // pred_check_branch
    %1025 = sbr.rel (0) target = $region17
  $region16: #{sen_embedding_loss.1} parent=0 // pred_region
    _
  $region17: #{sen_embedding_loss.1} parent=0 // pred_fallthru
    _
  // Predicated region
  $region18: #{sen_embedding_loss.1} parent=0 // pred_check
    _
  $region19: #{sen_embedding_loss.1} parent=0 // pred_check_branch
    %1027 = sbr.rel (0) target = $region21
  $region20: #{sen_embedding_loss.1} parent=0 // pred_region
    _
  $region21: #{sen_embedding_loss.1} parent=0 // pred_fallthru
    _

</llo_original>
